<compile_context>
chip_gen: v7x
topology: tpu7x:2x2x1
jax: 0.10.0
libtpu: 0.0.40
codegen_flags: <defaults>
</compile_context>

<pallas_src>
import functools

import numpy as np
import jax
import jax.numpy as jnp
from jax.experimental import pallas as pl
from jax.experimental.pallas import tpu as pltpu


def make_tps_constants(out_h, out_w, grid_size, reg_factor=0.0):
    """Replicates TpsGridGen.__init__ / compute_L_inverse in numpy (float32)."""
    N = grid_size * grid_size
    axis_coords = np.linspace(-1, 1, grid_size)
    # NOTE: torch code does  P_Y, P_X = np.meshgrid(axis_coords, axis_coords)
    P_Y, P_X = np.meshgrid(axis_coords, axis_coords)
    P_X = P_X.reshape(-1).astype(np.float32)      # (N,)
    P_Y = P_Y.reshape(-1).astype(np.float32)      # (N,)

    Xmat = np.broadcast_to(P_X[:, None], (N, N))
    Ymat = np.broadcast_to(P_Y[:, None], (N, N))
    D2 = (Xmat - Xmat.T) ** 2 + (Ymat - Ymat.T) ** 2
    D2 = D2.copy()
    D2[D2 == 0] = 1.0
    K = D2 * np.log(D2)
    if reg_factor != 0:
        K = K + np.eye(N, dtype=np.float32) * reg_factor
    O = np.ones((N, 1), dtype=np.float32)
    P = np.concatenate([O, P_X[:, None], P_Y[:, None]], axis=1)      # (N, 3)
    Z = np.zeros((3, 3), dtype=np.float32)
    L = np.concatenate(
        [np.concatenate([K, P], axis=1),
         np.concatenate([P.T, Z], axis=1)], axis=0).astype(np.float32)
    # TODO(synk): 12x12 matrix inverse is one-time host setup (as in torch __init__).
    Li = np.linalg.inv(L).astype(np.float32)                         # (N+3, N+3)

    grid_X, grid_Y = np.meshgrid(np.linspace(-1, 1, out_w),
                                 np.linspace(-1, 1, out_h))
    return (Li, P_X, P_Y, grid_X.astype(np.float32), grid_Y.astype(np.float32))


def _ceil_to(x, m):
    return -(-x // m) * m


_CHUNK = 8   # one sublane tile of output rows per register-resident accumulation step


def _tps_kernel(coef_ref, out_ref, basis_ref, *, N, H, W, tile_rows, lanes,
                px, py):
    t = pl.program_id(0)        # tile over flattened output rows ("parallel")
    b = pl.program_id(1)        # batch (innermost, "arbitrary")
    nc = N + 3

    # ---- batch-invariant basis [gx, gy, U_0..U_{N-1}], cached in VMEM -------
    # Even/odd lane pairs of the flattened row-major (H, W, 2) output share a
    # pixel; the interleaved coefficient plane selects x' vs y', so the basis
    # is simply duplicated across the pair.
    @pl.when(b == 0)
    def _():
        row = jax.lax.broadcasted_iota(jnp.int32, (tile_rows, lanes), 0)
        lane = jax.lax.broadcasted_iota(jnp.int32, (tile_rows, lanes), 1)
        flat = (t * tile_rows + row) * lanes + lane       # index into (2*H*W,)
        pix = (flat >> 1).astype(jnp.float32)             # pixel index h*W + w
        h = jnp.floor(pix / jnp.float32(W))
        w = pix - h * jnp.float32(W)
        # linspace(-1, 1, n)[i] == i * 2/(n-1) - 1   (== -1 for n == 1)
        sx = 2.0 / (W - 1) if W > 1 else 0.0
        sy = 2.0 / (H - 1) if H > 1 else 0.0
        gx = w * jnp.float32(sx) - jnp.float32(1.0)
        gy = h * jnp.float32(sy) - jnp.float32(1.0)
        basis_ref[0] = gx
        basis_ref[1] = gy
        tiny = jnp.float32(np.finfo(np.float32).tiny)
        # TODO(synk): even/odd lanes duplicate this work; a half-lane-width
        # compute + lane interleave would halve the EUP/VALU/vst cost of this
        # one-time phase (matters most on v5e's single store slot / small B).
        for k in range(N):
            dx = gx - jnp.float32(px[k])
            dy = gy - jnp.float32(py[k])
            d2 = dx * dx + dy * dy
            basis_ref[2 + k] = d2 * jnp.log(d2 + tiny)    # U = r^2 log r^2 (0 at r=0)

    # ---- per-batch accumulation (hot path: pure mul+add on the VPU) ---------
    # coef plane j is the lane vector [cx_j, cy_j, cx_j, cy_j, ...]:
    #   j = 0     -> affine constant
    #   j = 1, 2  -> affine gx, gy terms        (basis rows 0, 1)
    #   j = 3+k   -> TPS weight of U_k          (basis row 2+k)
    coef = coef_ref[0]                                     # (nc, lanes), ~24 KB
    cvec = [jnp.broadcast_to(coef[j:j + 1, :], (_CHUNK, lanes)) for j in range(nc)]

    def chunk_body(c, carry):
        r0 = pl.multiple_of(c * _CHUNK, _CHUNK)
        acc = cvec[0]
        for j in range(1, nc):
            acc = acc + cvec[j] * basis_ref[j - 1, pl.ds(r0, _CHUNK), :]
        out_ref[0, pl.ds(r0, _CHUNK), :] = acc
        return carry

    jax.lax.fori_loop(0, tile_rows // _CHUNK, chunk_body, 0, unroll=True)


def tps_grid_gen(theta, Li, P_X, P_Y, out_h, out_w, *, lanes=512, target_rows=256):
    """Warped sampling grid (B, H, W, 2); matches TpsGridGen.forward(theta)."""
    theta = jnp.asarray(theta, dtype=jnp.float32)
    B = theta.shape[0]
    P_X = np.asarray(P_X, dtype=np.float32).reshape(-1)
    P_Y = np.asarray(P_Y, dtype=np.float32).reshape(-1)
    N = int(P_X.shape[0])
    nc = N + 3
    H, W = int(out_h), int(out_w)
    assert lanes % 128 == 0 and lanes >= 256      # lane-dense, even (x,y) pairs

    # ---- hoisted tiny Li-solve: one (B, 2N) @ (2N, 2*nc) matmul -------------
    Li_np = np.asarray(Li, dtype=np.float32)
    # Per-axis coefficient layout [a0, a1, a2, w_0..w_{N-1}] = Q @ [Li_an^T | Li_nn^T]
    Mx = np.concatenate([Li_np[N:N + 3, :N].T, Li_np[:N, :N].T], axis=1)   # (N, nc)
    M = np.zeros((2 * N, nc, 2), dtype=np.float32)
    M[:N, :, 0] = Mx            # x' coefficients -> even lanes
    M[N:, :, 1] = Mx            # y' coefficients -> odd lanes
    pair = (theta @ jnp.asarray(M.reshape(2 * N, 2 * nc))).reshape(B, nc, 2)
    coef = jnp.tile(pair, (1, 1, lanes // 2))     # (B, nc, lanes) interleaved planes

    # ---- lane-dense tiling of the flattened row-major (H, W, 2) output ------
    total = 2 * H * W
    R = -(-total // lanes)                        # rows of the (R, lanes) plane
    R8 = _ceil_to(R, 8)                           # full sublane tiles only
    target_rows = max(8, (int(target_rows) // 8) * 8)
    tile_rows = min(target_rows, R8)
    num_tiles = -(-R8 // tile_rows)
    if num_tiles == 1 and R8 >= 16:
        # Split so the "parallel" axis has >= 2 tiles (keeps both v7x TCs busy).
        tile_rows = _ceil_to(-(-R8 // 2), 8)
        num_tiles = -(-R8 // tile_rows)
    R_pad = num_tiles * tile_rows

    # VMEM working set: basis scratch + double-buffered output block + coef.
    vmem_bytes = ((N + 2) * tile_rows * lanes * 4
                  + 2 * tile_rows * lanes * 4
                  + 2 * nc * lanes * 4)
    vmem_limit = int(min(48 * 1024 * 1024, max(32 * 1024 * 1024, 2 * vmem_bytes)))

    px = tuple(float(v) for v in P_X)
    py = tuple(float(v) for v in P_Y)
    kernel = functools.partial(_tps_kernel, N=N, H=H, W=W,
                               tile_rows=tile_rows, lanes=lanes, px=px, py=py)

    out = pl.pallas_call(
        kernel,
        out_shape=jax.ShapeDtypeStruct((B, R_pad, lanes), jnp.float32),
        grid_spec=pltpu.PrefetchScalarGridSpec(
            num_scalar_prefetch=0,
            grid=(num_tiles, B),                  # batch innermost: basis reused
            in_specs=[
                # per-batch interleaved coefficient planes (N+3, lanes) in VMEM
                pl.BlockSpec((1, nc, lanes), lambda t, b: (b, 0, 0)),
            ],
            out_specs=pl.BlockSpec((1, tile_rows, lanes),
                                   lambda t, b: (b, t, 0)),
            scratch_shapes=[pltpu.VMEM((N + 2, tile_rows, lanes), jnp.float32)],
        ),
        compiler_params=pltpu.CompilerParams(
            dimension_semantics=("parallel", "arbitrary"),
            vmem_limit_bytes=vmem_limit),
    )(coef)

    # Flat order already equals row-major (H, W, 2); reshape is free.
    flat = out.reshape(B, R_pad * lanes)[:, :total]
    return flat.reshape(B, H, W, 2)


def tps_grid_gen_ref(theta, Li, P_X, P_Y, grid_X, grid_Y):
    """Pure-JAX reference (mirrors the PyTorch forward) for validation."""
    N = P_X.shape[0]
    Qx, Qy = theta[:, :N], theta[:, N:]
    Wx = jnp.einsum("nm,bm->bn", Li[:N, :N], Qx)
    Wy = jnp.einsum("nm,bm->bn", Li[:N, :N], Qy)
    Ax = jnp.einsum("pm,bm->bp", Li[N:, :N], Qx)
    Ay = jnp.einsum("pm,bm->bp", Li[N:, :N], Qy)
    dx = grid_X[:, :, None] - P_X[None, None, :]
    dy = grid_Y[:, :, None] - P_Y[None, None, :]
    d2 = dx * dx + dy * dy
    d2 = jnp.where(d2 == 0, 1.0, d2)
    U = d2 * jnp.log(d2)                                   # (H, W, N)
    xprime = (Ax[:, 0, None, None] + Ax[:, 1, None, None] * grid_X[None]
              + Ax[:, 2, None, None] * grid_Y[None]
              + jnp.einsum("hwn,bn->bhw", U, Wx))
    yprime = (Ay[:, 0, None, None] + Ay[:, 1, None, None] * grid_X[None]
              + Ay[:, 2, None, None] * grid_Y[None]
              + jnp.einsum("hwn,bn->bhw", U, Wy))
    return jnp.stack([xprime, yprime], axis=-1)


if __name__ == "__main__":
    key = jax.random.PRNGKey(0)
    # Small demo (single 8-row tile) + a shape that exercises the multi-tile
    # split and the padded-tail path.
    for (out_h, out_w, grid_size, batch) in [(16, 16, 3, 2), (48, 48, 3, 2)]:
        Li_np, PX_np, PY_np, gX_np, gY_np = make_tps_constants(out_h, out_w, grid_size)
        N = grid_size * grid_size
        key, sub = jax.random.split(key)
        # theta ~ identity grid plus perturbation (same convention as the module)
        base = jnp.concatenate([jnp.asarray(PX_np), jnp.asarray(PY_np)])   # (2N,)
        theta = (base[None, :]
                 + 0.1 * jax.random.normal(sub, (batch, 2 * N), dtype=jnp.float32))

        out = tps_grid_gen(theta, Li_np, PX_np, PY_np, out_h, out_w)
        out = jax.block_until_ready(out)

        ref = tps_grid_gen_ref(theta, jnp.asarray(Li_np), jnp.asarray(PX_np),
                               jnp.asarray(PY_np), jnp.asarray(gX_np),
                               jnp.asarray(gY_np))
        np.testing.assert_allclose(np.asarray(out), np.asarray(ref),
                                   rtol=1e-3, atol=1e-3)
        assert out.shape == (batch, out_h, out_w, 2)
    print("KERNEL_OK")
</pallas_src>

<mosaic_0001>
module attributes {stable_mosaic.version = 11 : i64} {
  func.func @_tps_kernel(%arg0: i32, %arg1: i32, %arg2: memref<1x12x512xf32, #tpu.memory_space<vmem>>, %arg3: memref<1x8x512xf32, #tpu.memory_space<vmem>>, %arg4: memref<11x8x512xf32, #tpu.memory_space<vmem>>) attributes {dimension_semantics = [#tpu.dimension_semantics<parallel>, #tpu.dimension_semantics<arbitrary>], iteration_bounds = array<i64: 1, 2>, scalar_prefetch = 0 : i64, scratch_operands = 1 : i64, tpu.core_type = #tpu.core_type<tc>, window_params = [{transform_indices = @transform_0, window_bounds = array<i64: 1, 12, 512>}, {transform_indices = @transform_1, window_bounds = array<i64: 1, 8, 512>}]} {
    %c0_i32 = arith.constant 0 : i32
    %0 = arith.cmpi eq, %arg1, %c0_i32 : i32
    %1 = arith.extui %0 : i1 to i32
    %c0_i32_0 = arith.constant 0 : i32
    %2 = arith.cmpi ne, %1, %c0_i32_0 : i32
    scf.if %2 {
      %102 = tpu.iota {dimensions = array<i32: 0>} : vector<8x512xi32>
      %103 = tpu.iota {dimensions = array<i32: 1>} : vector<8x512xi32>
      %c8_i32_18 = arith.constant 8 : i32
      %104 = arith.muli %arg0, %c8_i32_18 : i32
      %105 = vector.broadcast %104 : i32 to vector<8x512xi32>
      %106 = arith.addi %105, %102 : vector<8x512xi32>
      %c512_i32 = arith.constant 512 : i32
      %107 = vector.broadcast %c512_i32 : i32 to vector<8x512xi32>
      %108 = arith.muli %106, %107 : vector<8x512xi32>
      %109 = arith.addi %108, %103 : vector<8x512xi32>
      %c1_i32_19 = arith.constant 1 : i32
      %110 = vector.broadcast %c1_i32_19 : i32 to vector<8x512xi32>
      %111 = arith.shrsi %109, %110 : vector<8x512xi32>
      %112 = arith.sitofp %111 : vector<8x512xi32> to vector<8x512xf32>
      %cst = arith.constant 1.600000e+01 : f32
      %113 = vector.broadcast %cst : f32 to vector<8x512xf32>
      %114 = arith.divf %112, %113 : vector<8x512xf32>
      %115 = math.floor %114 : vector<8x512xf32>
      %cst_20 = arith.constant 1.600000e+01 : f32
      %116 = vector.broadcast %cst_20 : f32 to vector<8x512xf32>
      %117 = arith.mulf %115, %116 : vector<8x512xf32>
      %118 = arith.subf %112, %117 : vector<8x512xf32>
      %cst_21 = arith.constant 0.13333334 : f32
      %119 = vector.broadcast %cst_21 : f32 to vector<8x512xf32>
      %120 = arith.mulf %118, %119 : vector<8x512xf32>
      %cst_22 = arith.constant 1.000000e+00 : f32
      %121 = vector.broadcast %cst_22 : f32 to vector<8x512xf32>
      %122 = arith.subf %120, %121 : vector<8x512xf32>
      %cst_23 = arith.constant 0.13333334 : f32
      %123 = vector.broadcast %cst_23 : f32 to vector<8x512xf32>
      %124 = arith.mulf %115, %123 : vector<8x512xf32>
      %cst_24 = arith.constant 1.000000e+00 : f32
      %125 = vector.broadcast %cst_24 : f32 to vector<8x512xf32>
      %126 = arith.subf %124, %125 : vector<8x512xf32>
      %c0_25 = arith.constant 0 : index
      %c0_26 = arith.constant 0 : index
      %c0_27 = arith.constant 0 : index
      %127 = vector.load %arg4[%c0_25, %c0_26, %c0_27] : memref<11x8x512xf32, #tpu.memory_space<vmem>>, vector<1x8x512xf32>
      %128 = vector.shape_cast %127 : vector<1x8x512xf32> to vector<8x512xf32>
      %129 = vector.shape_cast %122 : vector<8x512xf32> to vector<1x8x512xf32>
      tpu.vector_store %arg4[%c0_25, %c0_26, %c0_27], %129 {strides = array<i32>} : memref<11x8x512xf32, #tpu.memory_space<vmem>>, vector<1x8x512xf32>,
      %c1_28 = arith.constant 1 : index
      %c0_29 = arith.constant 0 : index
      %c0_30 = arith.constant 0 : index
      %130 = vector.load %arg4[%c1_28, %c0_29, %c0_30] : memref<11x8x512xf32, #tpu.memory_space<vmem>>, vector<1x8x512xf32>
      %131 = vector.shape_cast %130 : vector<1x8x512xf32> to vector<8x512xf32>
      %132 = vector.shape_cast %126 : vector<8x512xf32> to vector<1x8x512xf32>
      tpu.vector_store %arg4[%c1_28, %c0_29, %c0_30], %132 {strides = array<i32>} : memref<11x8x512xf32, #tpu.memory_space<vmem>>, vector<1x8x512xf32>,
      %cst_31 = arith.constant -1.000000e+00 : f32
      %133 = vector.broadcast %cst_31 : f32 to vector<8x512xf32>
      %134 = arith.subf %122, %133 : vector<8x512xf32>
      %cst_32 = arith.constant -1.000000e+00 : f32
      %135 = vector.broadcast %cst_32 : f32 to vector<8x512xf32>
      %136 = arith.subf %126, %135 : vector<8x512xf32>
      %137 = arith.mulf %134, %134 : vector<8x512xf32>
      %138 = arith.mulf %136, %136 : vector<8x512xf32>
      %139 = arith.addf %137, %138 : vector<8x512xf32>
      %cst_33 = arith.constant 1.17549435E-38 : f32
      %140 = vector.broadcast %cst_33 : f32 to vector<8x512xf32>
      %141 = arith.addf %139, %140 : vector<8x512xf32>
      %142 = math.log %141 : vector<8x512xf32>
      %143 = arith.mulf %139, %142 : vector<8x512xf32>
      %c2_34 = arith.constant 2 : index
      %c0_35 = arith.constant 0 : index
      %c0_36 = arith.constant 0 : index
      %144 = vector.load %arg4[%c2_34, %c0_35, %c0_36] : memref<11x8x512xf32, #tpu.memory_space<vmem>>, vector<1x8x512xf32>
      %145 = vector.shape_cast %144 : vector<1x8x512xf32> to vector<8x512xf32>
      %146 = vector.shape_cast %143 : vector<8x512xf32> to vector<1x8x512xf32>
      tpu.vector_store %arg4[%c2_34, %c0_35, %c0_36], %146 {strides = array<i32>} : memref<11x8x512xf32, #tpu.memory_space<vmem>>, vector<1x8x512xf32>,
      %cst_37 = arith.constant -1.000000e+00 : f32
      %147 = vector.broadcast %cst_37 : f32 to vector<8x512xf32>
      %148 = arith.subf %122, %147 : vector<8x512xf32>
      %cst_38 = arith.constant 0.000000e+00 : f32
      %149 = vector.broadcast %cst_38 : f32 to vector<8x512xf32>
      %150 = arith.subf %126, %149 : vector<8x512xf32>
      %151 = arith.mulf %148, %148 : vector<8x512xf32>
      %152 = arith.mulf %150, %150 : vector<8x512xf32>
      %153 = arith.addf %151, %152 : vector<8x512xf32>
      %cst_39 = arith.constant 1.17549435E-38 : f32
      %154 = vector.broadcast %cst_39 : f32 to vector<8x512xf32>
      %155 = arith.addf %153, %154 : vector<8x512xf32>
      %156 = math.log %155 : vector<8x512xf32>
      %157 = arith.mulf %153, %156 : vector<8x512xf32>
      %c3_40 = arith.constant 3 : index
      %c0_41 = arith.constant 0 : index
      %c0_42 = arith.constant 0 : index
      %158 = vector.load %arg4[%c3_40, %c0_41, %c0_42] : memref<11x8x512xf32, #tpu.memory_space<vmem>>, vector<1x8x512xf32>
      %159 = vector.shape_cast %158 : vector<1x8x512xf32> to vector<8x512xf32>
      %160 = vector.shape_cast %157 : vector<8x512xf32> to vector<1x8x512xf32>
      tpu.vector_store %arg4[%c3_40, %c0_41, %c0_42], %160 {strides = array<i32>} : memref<11x8x512xf32, #tpu.memory_space<vmem>>, vector<1x8x512xf32>,
      %cst_43 = arith.constant -1.000000e+00 : f32
      %161 = vector.broadcast %cst_43 : f32 to vector<8x512xf32>
      %162 = arith.subf %122, %161 : vector<8x512xf32>
      %cst_44 = arith.constant 1.000000e+00 : f32
      %163 = vector.broadcast %cst_44 : f32 to vector<8x512xf32>
      %164 = arith.subf %126, %163 : vector<8x512xf32>
      %165 = arith.mulf %162, %162 : vector<8x512xf32>
      %166 = arith.mulf %164, %164 : vector<8x512xf32>
      %167 = arith.addf %165, %166 : vector<8x512xf32>
      %cst_45 = arith.constant 1.17549435E-38 : f32
      %168 = vector.broadcast %cst_45 : f32 to vector<8x512xf32>
      %169 = arith.addf %167, %168 : vector<8x512xf32>
      %170 = math.log %169 : vector<8x512xf32>
      %171 = arith.mulf %167, %170 : vector<8x512xf32>
      %c4_46 = arith.constant 4 : index
      %c0_47 = arith.constant 0 : index
      %c0_48 = arith.constant 0 : index
      %172 = vector.load %arg4[%c4_46, %c0_47, %c0_48] : memref<11x8x512xf32, #tpu.memory_space<vmem>>, vector<1x8x512xf32>
      %173 = vector.shape_cast %172 : vector<1x8x512xf32> to vector<8x512xf32>
      %174 = vector.shape_cast %171 : vector<8x512xf32> to vector<1x8x512xf32>
      tpu.vector_store %arg4[%c4_46, %c0_47, %c0_48], %174 {strides = array<i32>} : memref<11x8x512xf32, #tpu.memory_space<vmem>>, vector<1x8x512xf32>,
      %cst_49 = arith.constant 0.000000e+00 : f32
      %175 = vector.broadcast %cst_49 : f32 to vector<8x512xf32>
      %176 = arith.subf %122, %175 : vector<8x512xf32>
      %cst_50 = arith.constant -1.000000e+00 : f32
      %177 = vector.broadcast %cst_50 : f32 to vector<8x512xf32>
      %178 = arith.subf %126, %177 : vector<8x512xf32>
      %179 = arith.mulf %176, %176 : vector<8x512xf32>
      %180 = arith.mulf %178, %178 : vector<8x512xf32>
      %181 = arith.addf %179, %180 : vector<8x512xf32>
      %cst_51 = arith.constant 1.17549435E-38 : f32
      %182 = vector.broadcast %cst_51 : f32 to vector<8x512xf32>
      %183 = arith.addf %181, %182 : vector<8x512xf32>
      %184 = math.log %183 : vector<8x512xf32>
      %185 = arith.mulf %181, %184 : vector<8x512xf32>
      %c5_52 = arith.constant 5 : index
      %c0_53 = arith.constant 0 : index
      %c0_54 = arith.constant 0 : index
      %186 = vector.load %arg4[%c5_52, %c0_53, %c0_54] : memref<11x8x512xf32, #tpu.memory_space<vmem>>, vector<1x8x512xf32>
      %187 = vector.shape_cast %186 : vector<1x8x512xf32> to vector<8x512xf32>
      %188 = vector.shape_cast %185 : vector<8x512xf32> to vector<1x8x512xf32>
      tpu.vector_store %arg4[%c5_52, %c0_53, %c0_54], %188 {strides = array<i32>} : memref<11x8x512xf32, #tpu.memory_space<vmem>>, vector<1x8x512xf32>,
      %cst_55 = arith.constant 0.000000e+00 : f32
      %189 = vector.broadcast %cst_55 : f32 to vector<8x512xf32>
      %190 = arith.subf %122, %189 : vector<8x512xf32>
      %cst_56 = arith.constant 0.000000e+00 : f32
      %191 = vector.broadcast %cst_56 : f32 to vector<8x512xf32>
      %192 = arith.subf %126, %191 : vector<8x512xf32>
      %193 = arith.mulf %190, %190 : vector<8x512xf32>
      %194 = arith.mulf %192, %192 : vector<8x512xf32>
      %195 = arith.addf %193, %194 : vector<8x512xf32>
      %cst_57 = arith.constant 1.17549435E-38 : f32
      %196 = vector.broadcast %cst_57 : f32 to vector<8x512xf32>
      %197 = arith.addf %195, %196 : vector<8x512xf32>
      %198 = math.log %197 : vector<8x512xf32>
      %199 = arith.mulf %195, %198 : vector<8x512xf32>
      %c6_58 = arith.constant 6 : index
      %c0_59 = arith.constant 0 : index
      %c0_60 = arith.constant 0 : index
      %200 = vector.load %arg4[%c6_58, %c0_59, %c0_60] : memref<11x8x512xf32, #tpu.memory_space<vmem>>, vector<1x8x512xf32>
      %201 = vector.shape_cast %200 : vector<1x8x512xf32> to vector<8x512xf32>
      %202 = vector.shape_cast %199 : vector<8x512xf32> to vector<1x8x512xf32>
      tpu.vector_store %arg4[%c6_58, %c0_59, %c0_60], %202 {strides = array<i32>} : memref<11x8x512xf32, #tpu.memory_space<vmem>>, vector<1x8x512xf32>,
      %cst_61 = arith.constant 0.000000e+00 : f32
      %203 = vector.broadcast %cst_61 : f32 to vector<8x512xf32>
      %204 = arith.subf %122, %203 : vector<8x512xf32>
      %cst_62 = arith.constant 1.000000e+00 : f32
      %205 = vector.broadcast %cst_62 : f32 to vector<8x512xf32>
      %206 = arith.subf %126, %205 : vector<8x512xf32>
      %207 = arith.mulf %204, %204 : vector<8x512xf32>
      %208 = arith.mulf %206, %206 : vector<8x512xf32>
      %209 = arith.addf %207, %208 : vector<8x512xf32>
      %cst_63 = arith.constant 1.17549435E-38 : f32
      %210 = vector.broadcast %cst_63 : f32 to vector<8x512xf32>
      %211 = arith.addf %209, %210 : vector<8x512xf32>
      %212 = math.log %211 : vector<8x512xf32>
      %213 = arith.mulf %209, %212 : vector<8x512xf32>
      %c7_64 = arith.constant 7 : index
      %c0_65 = arith.constant 0 : index
      %c0_66 = arith.constant 0 : index
      %214 = vector.load %arg4[%c7_64, %c0_65, %c0_66] : memref<11x8x512xf32, #tpu.memory_space<vmem>>, vector<1x8x512xf32>
      %215 = vector.shape_cast %214 : vector<1x8x512xf32> to vector<8x512xf32>
      %216 = vector.shape_cast %213 : vector<8x512xf32> to vector<1x8x512xf32>
      tpu.vector_store %arg4[%c7_64, %c0_65, %c0_66], %216 {strides = array<i32>} : memref<11x8x512xf32, #tpu.memory_space<vmem>>, vector<1x8x512xf32>,
      %cst_67 = arith.constant 1.000000e+00 : f32
      %217 = vector.broadcast %cst_67 : f32 to vector<8x512xf32>
      %218 = arith.subf %122, %217 : vector<8x512xf32>
      %cst_68 = arith.constant -1.000000e+00 : f32
      %219 = vector.broadcast %cst_68 : f32 to vector<8x512xf32>
      %220 = arith.subf %126, %219 : vector<8x512xf32>
      %221 = arith.mulf %218, %218 : vector<8x512xf32>
      %222 = arith.mulf %220, %220 : vector<8x512xf32>
      %223 = arith.addf %221, %222 : vector<8x512xf32>
      %cst_69 = arith.constant 1.17549435E-38 : f32
      %224 = vector.broadcast %cst_69 : f32 to vector<8x512xf32>
      %225 = arith.addf %223, %224 : vector<8x512xf32>
      %226 = math.log %225 : vector<8x512xf32>
      %227 = arith.mulf %223, %226 : vector<8x512xf32>
      %c8_70 = arith.constant 8 : index
      %c0_71 = arith.constant 0 : index
      %c0_72 = arith.constant 0 : index
      %228 = vector.load %arg4[%c8_70, %c0_71, %c0_72] : memref<11x8x512xf32, #tpu.memory_space<vmem>>, vector<1x8x512xf32>
      %229 = vector.shape_cast %228 : vector<1x8x512xf32> to vector<8x512xf32>
      %230 = vector.shape_cast %227 : vector<8x512xf32> to vector<1x8x512xf32>
      tpu.vector_store %arg4[%c8_70, %c0_71, %c0_72], %230 {strides = array<i32>} : memref<11x8x512xf32, #tpu.memory_space<vmem>>, vector<1x8x512xf32>,
      %cst_73 = arith.constant 1.000000e+00 : f32
      %231 = vector.broadcast %cst_73 : f32 to vector<8x512xf32>
      %232 = arith.subf %122, %231 : vector<8x512xf32>
      %cst_74 = arith.constant 0.000000e+00 : f32
      %233 = vector.broadcast %cst_74 : f32 to vector<8x512xf32>
      %234 = arith.subf %126, %233 : vector<8x512xf32>
      %235 = arith.mulf %232, %232 : vector<8x512xf32>
      %236 = arith.mulf %234, %234 : vector<8x512xf32>
      %237 = arith.addf %235, %236 : vector<8x512xf32>
      %cst_75 = arith.constant 1.17549435E-38 : f32
      %238 = vector.broadcast %cst_75 : f32 to vector<8x512xf32>
      %239 = arith.addf %237, %238 : vector<8x512xf32>
      %240 = math.log %239 : vector<8x512xf32>
      %241 = arith.mulf %237, %240 : vector<8x512xf32>
      %c9_76 = arith.constant 9 : index
      %c0_77 = arith.constant 0 : index
      %c0_78 = arith.constant 0 : index
      %242 = vector.load %arg4[%c9_76, %c0_77, %c0_78] : memref<11x8x512xf32, #tpu.memory_space<vmem>>, vector<1x8x512xf32>
      %243 = vector.shape_cast %242 : vector<1x8x512xf32> to vector<8x512xf32>
      %244 = vector.shape_cast %241 : vector<8x512xf32> to vector<1x8x512xf32>
      tpu.vector_store %arg4[%c9_76, %c0_77, %c0_78], %244 {strides = array<i32>} : memref<11x8x512xf32, #tpu.memory_space<vmem>>, vector<1x8x512xf32>,
      %cst_79 = arith.constant 1.000000e+00 : f32
      %245 = vector.broadcast %cst_79 : f32 to vector<8x512xf32>
      %246 = arith.subf %122, %245 : vector<8x512xf32>
      %cst_80 = arith.constant 1.000000e+00 : f32
      %247 = vector.broadcast %cst_80 : f32 to vector<8x512xf32>
      %248 = arith.subf %126, %247 : vector<8x512xf32>
      %249 = arith.mulf %246, %246 : vector<8x512xf32>
      %250 = arith.mulf %248, %248 : vector<8x512xf32>
      %251 = arith.addf %249, %250 : vector<8x512xf32>
      %cst_81 = arith.constant 1.17549435E-38 : f32
      %252 = vector.broadcast %cst_81 : f32 to vector<8x512xf32>
      %253 = arith.addf %251, %252 : vector<8x512xf32>
      %254 = math.log %253 : vector<8x512xf32>
      %255 = arith.mulf %251, %254 : vector<8x512xf32>
      %c10_82 = arith.constant 10 : index
      %c0_83 = arith.constant 0 : index
      %c0_84 = arith.constant 0 : index
      %256 = vector.load %arg4[%c10_82, %c0_83, %c0_84] : memref<11x8x512xf32, #tpu.memory_space<vmem>>, vector<1x8x512xf32>
      %257 = vector.shape_cast %256 : vector<1x8x512xf32> to vector<8x512xf32>
      %258 = vector.shape_cast %255 : vector<8x512xf32> to vector<1x8x512xf32>
      tpu.vector_store %arg4[%c10_82, %c0_83, %c0_84], %258 {strides = array<i32>} : memref<11x8x512xf32, #tpu.memory_space<vmem>>, vector<1x8x512xf32>,
    } else {
    }
    %c0 = arith.constant 0 : index
    %c0_1 = arith.constant 0 : index
    %c0_2 = arith.constant 0 : index
    %3 = vector.load %arg2[%c0, %c0_1, %c0_2] : memref<1x12x512xf32, #tpu.memory_space<vmem>>, vector<1x12x512xf32>
    %4 = vector.shape_cast %3 : vector<1x12x512xf32> to vector<12x512xf32>
    %5 = vector.extract_strided_slice %4 {offsets = [0, 0], sizes = [1, 512], strides = [1, 1]} : vector<12x512xf32> to vector<1x512xf32>
    %6 = vector.shape_cast %5 : vector<1x512xf32> to vector<1x512xf32>
    %7 = vector.broadcast %6 : vector<1x512xf32> to vector<8x512xf32>
    %8 = vector.extract_strided_slice %4 {offsets = [1, 0], sizes = [1, 512], strides = [1, 1]} : vector<12x512xf32> to vector<1x512xf32>
    %9 = vector.shape_cast %8 : vector<1x512xf32> to vector<1x512xf32>
    %10 = vector.broadcast %9 : vector<1x512xf32> to vector<8x512xf32>
    %11 = vector.extract_strided_slice %4 {offsets = [2, 0], sizes = [1, 512], strides = [1, 1]} : vector<12x512xf32> to vector<1x512xf32>
    %12 = vector.shape_cast %11 : vector<1x512xf32> to vector<1x512xf32>
    %13 = vector.broadcast %12 : vector<1x512xf32> to vector<8x512xf32>
    %14 = vector.extract_strided_slice %4 {offsets = [3, 0], sizes = [1, 512], strides = [1, 1]} : vector<12x512xf32> to vector<1x512xf32>
    %15 = vector.shape_cast %14 : vector<1x512xf32> to vector<1x512xf32>
    %16 = vector.broadcast %15 : vector<1x512xf32> to vector<8x512xf32>
    %17 = vector.extract_strided_slice %4 {offsets = [4, 0], sizes = [1, 512], strides = [1, 1]} : vector<12x512xf32> to vector<1x512xf32>
    %18 = vector.shape_cast %17 : vector<1x512xf32> to vector<1x512xf32>
    %19 = vector.broadcast %18 : vector<1x512xf32> to vector<8x512xf32>
    %20 = vector.extract_strided_slice %4 {offsets = [5, 0], sizes = [1, 512], strides = [1, 1]} : vector<12x512xf32> to vector<1x512xf32>
    %21 = vector.shape_cast %20 : vector<1x512xf32> to vector<1x512xf32>
    %22 = vector.broadcast %21 : vector<1x512xf32> to vector<8x512xf32>
    %23 = vector.extract_strided_slice %4 {offsets = [6, 0], sizes = [1, 512], strides = [1, 1]} : vector<12x512xf32> to vector<1x512xf32>
    %24 = vector.shape_cast %23 : vector<1x512xf32> to vector<1x512xf32>
    %25 = vector.broadcast %24 : vector<1x512xf32> to vector<8x512xf32>
    %26 = vector.extract_strided_slice %4 {offsets = [7, 0], sizes = [1, 512], strides = [1, 1]} : vector<12x512xf32> to vector<1x512xf32>
    %27 = vector.shape_cast %26 : vector<1x512xf32> to vector<1x512xf32>
    %28 = vector.broadcast %27 : vector<1x512xf32> to vector<8x512xf32>
    %29 = vector.extract_strided_slice %4 {offsets = [8, 0], sizes = [1, 512], strides = [1, 1]} : vector<12x512xf32> to vector<1x512xf32>
    %30 = vector.shape_cast %29 : vector<1x512xf32> to vector<1x512xf32>
    %31 = vector.broadcast %30 : vector<1x512xf32> to vector<8x512xf32>
    %32 = vector.extract_strided_slice %4 {offsets = [9, 0], sizes = [1, 512], strides = [1, 1]} : vector<12x512xf32> to vector<1x512xf32>
    %33 = vector.shape_cast %32 : vector<1x512xf32> to vector<1x512xf32>
    %34 = vector.broadcast %33 : vector<1x512xf32> to vector<8x512xf32>
    %35 = vector.extract_strided_slice %4 {offsets = [10, 0], sizes = [1, 512], strides = [1, 1]} : vector<12x512xf32> to vector<1x512xf32>
    %36 = vector.shape_cast %35 : vector<1x512xf32> to vector<1x512xf32>
    %37 = vector.broadcast %36 : vector<1x512xf32> to vector<8x512xf32>
    %38 = vector.extract_strided_slice %4 {offsets = [11, 0], sizes = [1, 512], strides = [1, 1]} : vector<12x512xf32> to vector<1x512xf32>
    %39 = vector.shape_cast %38 : vector<1x512xf32> to vector<1x512xf32>
    %40 = vector.broadcast %39 : vector<1x512xf32> to vector<8x512xf32>
    %c0_i32_3 = arith.constant 0 : i32
    %c8_i32 = arith.constant 8 : i32
    %41 = arith.muli %c0_i32_3, %c8_i32 : i32
    %42 = tpu.assume_multiple %41, 8 : i32
    %c0_4 = arith.constant 0 : index
    %43 = arith.index_cast %42 : i32 to index
    %c0_5 = arith.constant 0 : index
    %44 = vector.load %arg4[%c0_4, %43, %c0_5] : memref<11x8x512xf32, #tpu.memory_space<vmem>>, vector<1x8x512xf32>
    %45 = vector.shape_cast %44 : vector<1x8x512xf32> to vector<8x512xf32>
    %46 = arith.mulf %10, %45 : vector<8x512xf32>
    %47 = arith.addf %7, %46 : vector<8x512xf32>
    %c1 = arith.constant 1 : index
    %48 = arith.index_cast %42 : i32 to index
    %c0_6 = arith.constant 0 : index
    %49 = vector.load %arg4[%c1, %48, %c0_6] : memref<11x8x512xf32, #tpu.memory_space<vmem>>, vector<1x8x512xf32>
    %50 = vector.shape_cast %49 : vector<1x8x512xf32> to vector<8x512xf32>
    %51 = arith.mulf %13, %50 : vector<8x512xf32>
    %52 = arith.addf %47, %51 : vector<8x512xf32>
    %c2 = arith.constant 2 : index
    %53 = arith.index_cast %42 : i32 to index
    %c0_7 = arith.constant 0 : index
    %54 = vector.load %arg4[%c2, %53, %c0_7] : memref<11x8x512xf32, #tpu.memory_space<vmem>>, vector<1x8x512xf32>
    %55 = vector.shape_cast %54 : vector<1x8x512xf32> to vector<8x512xf32>
    %56 = arith.mulf %16, %55 : vector<8x512xf32>
    %57 = arith.addf %52, %56 : vector<8x512xf32>
    %c3 = arith.constant 3 : index
    %58 = arith.index_cast %42 : i32 to index
    %c0_8 = arith.constant 0 : index
    %59 = vector.load %arg4[%c3, %58, %c0_8] : memref<11x8x512xf32, #tpu.memory_space<vmem>>, vector<1x8x512xf32>
    %60 = vector.shape_cast %59 : vector<1x8x512xf32> to vector<8x512xf32>
    %61 = arith.mulf %19, %60 : vector<8x512xf32>
    %62 = arith.addf %57, %61 : vector<8x512xf32>
    %c4 = arith.constant 4 : index
    %63 = arith.index_cast %42 : i32 to index
    %c0_9 = arith.constant 0 : index
    %64 = vector.load %arg4[%c4, %63, %c0_9] : memref<11x8x512xf32, #tpu.memory_space<vmem>>, vector<1x8x512xf32>
    %65 = vector.shape_cast %64 : vector<1x8x512xf32> to vector<8x512xf32>
    %66 = arith.mulf %22, %65 : vector<8x512xf32>
    %67 = arith.addf %62, %66 : vector<8x512xf32>
    %c5 = arith.constant 5 : index
    %68 = arith.index_cast %42 : i32 to index
    %c0_10 = arith.constant 0 : index
    %69 = vector.load %arg4[%c5, %68, %c0_10] : memref<11x8x512xf32, #tpu.memory_space<vmem>>, vector<1x8x512xf32>
    %70 = vector.shape_cast %69 : vector<1x8x512xf32> to vector<8x512xf32>
    %71 = arith.mulf %25, %70 : vector<8x512xf32>
    %72 = arith.addf %67, %71 : vector<8x512xf32>
    %c6 = arith.constant 6 : index
    %73 = arith.index_cast %42 : i32 to index
    %c0_11 = arith.constant 0 : index
    %74 = vector.load %arg4[%c6, %73, %c0_11] : memref<11x8x512xf32, #tpu.memory_space<vmem>>, vector<1x8x512xf32>
    %75 = vector.shape_cast %74 : vector<1x8x512xf32> to vector<8x512xf32>
    %76 = arith.mulf %28, %75 : vector<8x512xf32>
    %77 = arith.addf %72, %76 : vector<8x512xf32>
    %c7 = arith.constant 7 : index
    %78 = arith.index_cast %42 : i32 to index
    %c0_12 = arith.constant 0 : index
    %79 = vector.load %arg4[%c7, %78, %c0_12] : memref<11x8x512xf32, #tpu.memory_space<vmem>>, vector<1x8x512xf32>
    %80 = vector.shape_cast %79 : vector<1x8x512xf32> to vector<8x512xf32>
    %81 = arith.mulf %31, %80 : vector<8x512xf32>
    %82 = arith.addf %77, %81 : vector<8x512xf32>
    %c8 = arith.constant 8 : index
    %83 = arith.index_cast %42 : i32 to index
    %c0_13 = arith.constant 0 : index
    %84 = vector.load %arg4[%c8, %83, %c0_13] : memref<11x8x512xf32, #tpu.memory_space<vmem>>, vector<1x8x512xf32>
    %85 = vector.shape_cast %84 : vector<1x8x512xf32> to vector<8x512xf32>
    %86 = arith.mulf %34, %85 : vector<8x512xf32>
    %87 = arith.addf %82, %86 : vector<8x512xf32>
    %c9 = arith.constant 9 : index
    %88 = arith.index_cast %42 : i32 to index
    %c0_14 = arith.constant 0 : index
    %89 = vector.load %arg4[%c9, %88, %c0_14] : memref<11x8x512xf32, #tpu.memory_space<vmem>>, vector<1x8x512xf32>
    %90 = vector.shape_cast %89 : vector<1x8x512xf32> to vector<8x512xf32>
    %91 = arith.mulf %37, %90 : vector<8x512xf32>
    %92 = arith.addf %87, %91 : vector<8x512xf32>
    %c10 = arith.constant 10 : index
    %93 = arith.index_cast %42 : i32 to index
    %c0_15 = arith.constant 0 : index
    %94 = vector.load %arg4[%c10, %93, %c0_15] : memref<11x8x512xf32, #tpu.memory_space<vmem>>, vector<1x8x512xf32>
    %95 = vector.shape_cast %94 : vector<1x8x512xf32> to vector<8x512xf32>
    %96 = arith.mulf %40, %95 : vector<8x512xf32>
    %97 = arith.addf %92, %96 : vector<8x512xf32>
    %c0_16 = arith.constant 0 : index
    %98 = arith.index_cast %42 : i32 to index
    %c0_17 = arith.constant 0 : index
    %99 = vector.load %arg3[%c0_16, %98, %c0_17] : memref<1x8x512xf32, #tpu.memory_space<vmem>>, vector<1x8x512xf32>
    %100 = vector.shape_cast %99 : vector<1x8x512xf32> to vector<8x512xf32>
    %101 = vector.shape_cast %97 : vector<8x512xf32> to vector<1x8x512xf32>
    tpu.vector_store %arg3[%c0_16, %98, %c0_17], %101 {strides = array<i32>} : memref<1x8x512xf32, #tpu.memory_space<vmem>>, vector<1x8x512xf32>,
    %c1_i32 = arith.constant 1 : i32
    return
  }
  func.func @transform_0(%arg0: i32, %arg1: i32) -> (i32, i32, i32) {
    %c0_i32 = arith.constant 0 : i32
    %c0_i32_0 = arith.constant 0 : i32
    %c0_i32_1 = arith.constant 0 : i32
    return %arg1, %c0_i32, %c0_i32_0 : i32, i32, i32
  }
  func.func @transform_1(%arg0: i32, %arg1: i32) -> (i32, i32, i32) {
    %c0_i32 = arith.constant 0 : i32
    %c0_i32_0 = arith.constant 0 : i32
    return %arg1, %arg0, %c0_i32 : i32, i32, i32
  }
}

</mosaic_0001>

<llo_original>
// kernel: tpu_custom_call.1
$region0: #{tpu_custom_call.1}
  #allocation0 [shape = 'u32[]', space=smem, size = 0x4, offset = 0x4, fixed_abs, tag = 'smem constant byte address 0x4 - core index']
  #allocation1 [shape = 'u32[144,128]{1,0:T(1,128)}', space=vmem, size = 0x12000, scoped, tag = 'internal scratch']
  #allocation2 [shape = 'f32[11,8,512]{2,1,0:T(8,128)}', space=vmem, size = 0x2c000, scoped, tag = 'scratch operand']
  %s0 = inlined_call_operand.vmem [shape: f32[2,12,512], index: 0, kind: input, shape index: {}]
  %s1 = inlined_call_operand.hbm [shape: f32[2,8,512], index: 1, kind: output, shape index: {}]
  %s2 = sld [smem:[#allocation0]]
  $region41: #{tpu_custom_call.1} parent=0
    _
  %s4 = ssub.s32 1, %s2
  %s5 = scalar_select 0, %s4, %s2
  $region1: #{tpu_custom_call.1} parent=0
    #allocation3 [shape = 'u8[32768]{0}', space=vmem, size = 0x8000, scoped, tag = 'output window, operand 0']
    #allocation4 [shape = 's32[2]{0}', space=sflag, size = 0x8, scoped, tag = 'scoped memory for tpu_custom_call.1']
    %6 = vsyncpa [#allocation4], 0
    %s7 = scalar_lea.sflag [#allocation4], 1
    %8 = vsyncpa %s7, 0
    loop: start=0, step=1, limit=4
    $region2: #{tpu_custom_call.1} parent=1 // loop_pre_header
      _
    $region3: #{tpu_custom_call.1} parent=1 // loop_header
      %s10 = sphi 0, %s14
      %p11 = scmp.ge.s32.totalorder %s10, 4
      %s17 = sphi 0, %s29
      %s18 = sphi 0, %s25
      %s19 = sphi 0, %s17
      %s20 = sphi 0, %s18
      %s21 = sphi 0, %s19
      %s22 = sphi 0, %s20
      %s32 = sphi 0, %s34
      %s35 = sphi 0, %s32
      %s36 = sphi 0, %s35
      %s52 = sphi 0, %s36
      %s60 = sphi 0, %s62
      %s63 = sphi 0, %s60
      %s64 = sphi 0, %s63
      %s80 = sphi 0, %s64
    $region4: #{tpu_custom_call.1} parent=1 // loop_header_branch
      %13 = sbr.rel (%p11) target = $region8
    $region5: #{tpu_custom_call.1} parent=1 // loop_body
      %s15 = ssub.s32 %s10, 1
      %s16 = ssub.s32 %s10, 2
      %s23 = sadd.s32 1, %s18
      %p24 = scmp.ge.s32.totalorder %s23, 2
      %s25 = scalar_select %p24, 0, %s23
      %s26 = sadd.s32 1, %s17
      %s27 = scalar_select %p24, %s26, %s17
      %p28 = scmp.ge.s32.totalorder %s27, 1
      %s29 = scalar_select %p28, 0, %s27
      %s30 = ssub.s32 %s18, %s25
      %p31 = scmp.eq.s32.totalorder %s30, 0
      %s33 = sadd.s32 %s32, 1
      %s34 = scalar_select %p31, %s32, %s33
      %p37 = pneg %p31
      %p38 = scmp.eq.s32.totalorder %s10, 1
      %p39 = por %p37, %p38
      %p40 = scmp.ne.s32.totalorder %s32, %s35
      %p41 = scmp.eq.s32.totalorder %s10, 0
      %p42 = por %p40, %p41
      %p43 = scmp.ne.s32.totalorder %s32, %s35
      %p44 = scmp.eq.s32.totalorder %s15, 1
      %p45 = por %p43, %p44
      %p46 = scmp.ne.s32.totalorder %s35, %s36
      %p47 = scmp.eq.s32.totalorder %s15, 0
      %p48 = por %p46, %p47
      %p49 = scmp.ne.s32.totalorder %s35, %s36
      %p50 = scmp.eq.s32.totalorder %s16, 1
      %p51 = por %p49, %p50
      %p53 = scmp.ne.s32.totalorder %s36, %s52
      %p54 = scmp.eq.s32.totalorder %s16, 0
      %p55 = por %p53, %p54
      %s56 = ssub.s32 %s18, %s25
      %s57 = ssub.s32 %s17, %s29
      %s58 = sor.u32 %s56, %s57
      %p59 = scmp.eq.s32.totalorder %s58, 0
      %s61 = sadd.s32 %s60, 1
      %s62 = scalar_select %p59, %s60, %s61
      %p65 = pneg %p59
      %p66 = scmp.eq.s32.totalorder %s10, 1
      %p67 = por %p65, %p66
      %p68 = scmp.ne.s32.totalorder %s60, %s63
      %p69 = scmp.eq.s32.totalorder %s10, 0
      %p70 = por %p68, %p69
      %p71 = scmp.ne.s32.totalorder %s60, %s63
      %p72 = scmp.eq.s32.totalorder %s15, 1
      %p73 = por %p71, %p72
      %p74 = scmp.ne.s32.totalorder %s63, %s64
      %p75 = scmp.eq.s32.totalorder %s15, 0
      %p76 = por %p74, %p75
      %p77 = scmp.ne.s32.totalorder %s63, %s64
      %p78 = scmp.eq.s32.totalorder %s16, 1
      %p79 = por %p77, %p78
      %p81 = scmp.ne.s32.totalorder %s64, %s80
      %p82 = scmp.eq.s32.totalorder %s16, 0
      %p83 = por %p81, %p82
      %p84 = scmp.le.s32.totalorder 1, %s10
      %p85 = scmp.lt.s32.totalorder %s10, 3
      %p86 = pnand %p84, %p85
      %p87 = pneg %p86
      // Predicated region
      $region9: #{tpu_custom_call.1} parent=5 // pred_check
        _
      $region10: #{tpu_custom_call.1} parent=5 // pred_check_branch
        %89 = sbr.rel (%p86) target = $region12
      $region11: #{tpu_custom_call.1} parent=5 // pred_region
        %s90 = ssub.s32 %s10, 1
      $region12: #{tpu_custom_call.1} parent=5 // pred_fallthru
        _
      %p91 = scmp.lt.s32.totalorder %s10, 2
      // Predicated region
      $region13: #{tpu_custom_call.1} parent=5 // pred_check
        %p92 = pneg %p91
      $region14: #{tpu_custom_call.1} parent=5 // pred_check_branch
        %94 = sbr.rel (%p92) target = $region16
      $region15: #{tpu_custom_call.1} parent=5 // pred_region
        // Predicated region
        $region17: #{tpu_custom_call.1} parent=15 // pred_check
          %p95 = pneg %p42
        $region18: #{tpu_custom_call.1} parent=15 // pred_check_branch
          %97 = sbr.rel (%p95) target = $region20
        $region19: #{tpu_custom_call.1} parent=15 // pred_region
          %p98 = scmp.lt.s32.totalorder %s18, 1
          %s99 = scalar_select %p98, %s18, 1
          %s100 = smul.addr %s99, 8
          %s101 = smul.addr %s100, 8
          %s102 = scalar_lea.vmem %s0, %s101
        $region20: #{tpu_custom_call.1} parent=15 // pred_fallthru
          _
      $region16: #{tpu_custom_call.1} parent=5 // pred_fallthru
        _
      %p103 = scmp.le.s32.totalorder 1, %s10
      %p104 = scmp.lt.s32.totalorder %s10, 3
      %p105 = pnand %p103, %p104
      %p106 = pneg %p105
      // Predicated region
      $region21: #{tpu_custom_call.1} parent=5 // pred_check
        _
      $region22: #{tpu_custom_call.1} parent=5 // pred_check_branch
        %108 = sbr.rel (%p105) target = $region24
      $region23: #{tpu_custom_call.1} parent=5 // pred_region
        %s109 = ssub.s32 %s10, 1
        %p110 = scmp.lt.s32.totalorder %s20, 1
        %s111 = scalar_select %p110, %s20, 1
        %s112 = smul.addr %s111, 8
        %s113 = smul.addr %s112, 8
        %s114 = scalar_lea.vmem %s0, %s113
        %p115 = pneg %p48
        %p116 = pneg %p45
        %p117 = pneg %p76
        %p118 = pneg %p73
        %s119 = sand.u32 %s63, 1
        %s120 = scalar_lea.sflag [#allocation4], %s119
        %s121 = sand.u32 %s63, 1
        %s122 = smul.addr %s121, 32
        %s123 = scalar_lea.vmem [#allocation3], %s122
        %p124 = scmp.lt.s32.totalorder %s20, 1
        %s125 = scalar_select %p124, %s20, 1
        %s126 = smul.addr %s125, 8
        %s127 = smul.addr %s126, 8
        %s128 = scalar_lea.vmem %s0, %s127
        %p129 = scmp.eq.s32.totalorder %s20, 0
        // Predicated region
        $region25: #{tpu_custom_call.1} parent=23 // pred_check
          %p130 = pneg %p129
        $region26: #{tpu_custom_call.1} parent=23 // pred_check_branch
          %132 = sbr.rel (%p130) target = $region28
        $region27: #{tpu_custom_call.1} parent=23 // pred_region
          %v133 = vlaneseq
          %v134 = vshrl.u32 %v133, 7
          %v135 = vlaneseq
          %v136 = vand.u32 %v135, 127
          %v137 = vadd.s32 %v136, 128
          %v138 = vadd.s32 %v136, 256
          %v139 = vadd.s32 %v136, 384
          %s140 = smul.u32 %s19, 8
          %v141 = vstv %s140
          %v142 = vadd.s32 %v141, %v134
          %v143 = vmul.u32 %v142, 512
          %v144 = vadd.s32 %v143, %v136
          %v145 = vadd.s32 %v143, %v137
          %v146 = vadd.s32 %v143, %v138
          %v147 = vadd.s32 %v143, %v139
          %v148 = vshra.s32 %v144, 1
          %v149 = vshra.s32 %v145, 1
          %v150 = vshra.s32 %v146, 1
          %v151 = vshra.s32 %v147, 1
          %v152 = vcvt.s32.f32 %v148
          %v153 = vcvt.s32.f32 %v149
          %v154 = vcvt.s32.f32 %v150
          %v155 = vcvt.s32.f32 %v151
          %v156 = vrcp.pop 16.0
          %v157 = vmul.f32 %v152, %v156
          %v158 = vmul.f32 %v153, %v156
          %v159 = vmul.f32 %v154, %v156
          %v160 = vmul.f32 %v155, %v156
          %v161 = vfloor.f32 %v157
          %v162 = vfloor.f32 %v158
          %v163 = vfloor.f32 %v159
          %v164 = vfloor.f32 %v160
          %v165 = vmul.f32 %v161, 16.0
          %v166 = vmul.f32 %v162, 16.0
          %v167 = vmul.f32 %v163, 16.0
          %v168 = vmul.f32 %v164, 16.0
          %v169 = vsub.f32 %v152, %v165
          %v170 = vsub.f32 %v153, %v166
          %v171 = vsub.f32 %v154, %v167
          %v172 = vsub.f32 %v155, %v168
          %v173 = vmul.f32 %v169, 0.13333334
          %v174 = vmul.f32 %v170, 0.13333334
          %v175 = vmul.f32 %v171, 0.13333334
          %v176 = vmul.f32 %v172, 0.13333334
          %v177 = vsub.f32 %v173, 1.0
          %v178 = vsub.f32 %v174, 1.0
          %v179 = vsub.f32 %v175, 1.0
          %v180 = vsub.f32 %v176, 1.0
          %v181 = vmul.f32 %v161, 0.13333334
          %v182 = vmul.f32 %v162, 0.13333334
          %v183 = vmul.f32 %v163, 0.13333334
          %v184 = vmul.f32 %v164, 0.13333334
          %v185 = vsub.f32 %v181, 1.0
          %v186 = vsub.f32 %v182, 1.0
          %v187 = vsub.f32 %v183, 1.0
          %v188 = vsub.f32 %v184, 1.0
          %189 = vst [vmem:[#allocation2] sm:$0xff] %v177
          %190 = vst [vmem:[#allocation2 + $0x8] sm:$0xff] %v178
          %191 = vst [vmem:[#allocation2 + $0x10] sm:$0xff] %v179
          %192 = vst [vmem:[#allocation2 + $0x18] sm:$0xff] %v180
          %s193 = scalar_lea.vmem [#allocation2], 32
          %194 = vst [vmem:[%s193] sm:$0xff] %v185
          %195 = vst [vmem:[%s193 + $0x8] sm:$0xff] %v186
          %196 = vst [vmem:[%s193 + $0x10] sm:$0xff] %v187
          %197 = vst [vmem:[%s193 + $0x18] sm:$0xff] %v188
          %v198 = vsub.f32 %v177, -1.0
          %v199 = vsub.f32 %v178, -1.0
          %v200 = vsub.f32 %v179, -1.0
          %v201 = vsub.f32 %v180, -1.0
          %v202 = vsub.f32 %v185, -1.0
          %v203 = vsub.f32 %v186, -1.0
          %v204 = vsub.f32 %v187, -1.0
          %v205 = vsub.f32 %v188, -1.0
          %v206 = vmul.f32 %v198, %v198
          %v207 = vmul.f32 %v199, %v199
          %v208 = vmul.f32 %v200, %v200
          %v209 = vmul.f32 %v201, %v201
          %v210 = vmul.f32 %v202, %v202
          %v211 = vmul.f32 %v203, %v203
          %v212 = vmul.f32 %v204, %v204
          %v213 = vmul.f32 %v205, %v205
          %v214 = vadd.f32 %v206, %v210
          %v215 = vadd.f32 %v207, %v211
          %v216 = vadd.f32 %v208, %v212
          %v217 = vadd.f32 %v209, %v213
          %v218 = vadd.f32 %v214, 1.1754944e-38
          %v219 = vadd.f32 %v215, 1.1754944e-38
          %v220 = vadd.f32 %v216, 1.1754944e-38
          %v221 = vadd.f32 %v217, 1.1754944e-38
          %v222 = vlog2.pop %v218
          %v223 = vmul.f32 %v222, 0.6931472
          %v224 = vlog2.pop %v219
          %v225 = vmul.f32 %v224, 0.6931472
          %v226 = vlog2.pop %v220
          %v227 = vmul.f32 %v226, 0.6931472
          %v228 = vlog2.pop %v221
          %v229 = vmul.f32 %v228, 0.6931472
          %v230 = vmul.f32 %v214, %v223
          %v231 = vmul.f32 %v215, %v225
          %v232 = vmul.f32 %v216, %v227
          %v233 = vmul.f32 %v217, %v229
          %s234 = scalar_lea.vmem [#allocation2], 64
          %235 = vst [vmem:[%s234] sm:$0xff] %v230
          %236 = vst [vmem:[%s234 + $0x8] sm:$0xff] %v231
          %237 = vst [vmem:[%s234 + $0x10] sm:$0xff] %v232
          %238 = vst [vmem:[%s234 + $0x18] sm:$0xff] %v233
          %v239 = vmul.f32 %v185, %v185
          %v240 = vmul.f32 %v186, %v186
          %v241 = vmul.f32 %v187, %v187
          %v242 = vmul.f32 %v188, %v188
          %v243 = vadd.f32 %v206, %v239
          %v244 = vadd.f32 %v207, %v240
          %v245 = vadd.f32 %v208, %v241
          %v246 = vadd.f32 %v209, %v242
          %v247 = vadd.f32 %v243, 1.1754944e-38
          %v248 = vadd.f32 %v244, 1.1754944e-38
          %v249 = vadd.f32 %v245, 1.1754944e-38
          %v250 = vadd.f32 %v246, 1.1754944e-38
          %v251 = vlog2.pop %v247
          %v252 = vmul.f32 %v251, 0.6931472
          %v253 = vlog2.pop %v248
          %v254 = vmul.f32 %v253, 0.6931472
          %v255 = vlog2.pop %v249
          %v256 = vmul.f32 %v255, 0.6931472
          %v257 = vlog2.pop %v250
          %v258 = vmul.f32 %v257, 0.6931472
          %v259 = vmul.f32 %v243, %v252
          %v260 = vmul.f32 %v244, %v254
          %v261 = vmul.f32 %v245, %v256
          %v262 = vmul.f32 %v246, %v258
          %s263 = scalar_lea.vmem [#allocation2], 96
          %264 = vst [vmem:[%s263] sm:$0xff] %v259
          %265 = vst [vmem:[%s263 + $0x8] sm:$0xff] %v260
          %266 = vst [vmem:[%s263 + $0x10] sm:$0xff] %v261
          %267 = vst [vmem:[%s263 + $0x18] sm:$0xff] %v262
          %v268 = vsub.f32 %v185, 1.0
          %v269 = vsub.f32 %v186, 1.0
          %v270 = vsub.f32 %v187, 1.0
          %v271 = vsub.f32 %v188, 1.0
          %v272 = vmul.f32 %v268, %v268
          %v273 = vmul.f32 %v269, %v269
          %v274 = vmul.f32 %v270, %v270
          %v275 = vmul.f32 %v271, %v271
          %v276 = vadd.f32 %v206, %v272
          %v277 = vadd.f32 %v207, %v273
          %v278 = vadd.f32 %v208, %v274
          %v279 = vadd.f32 %v209, %v275
          %v280 = vadd.f32 %v276, 1.1754944e-38
          %v281 = vadd.f32 %v277, 1.1754944e-38
          %v282 = vadd.f32 %v278, 1.1754944e-38
          %v283 = vadd.f32 %v279, 1.1754944e-38
          %v284 = vlog2.pop %v280
          %v285 = vmul.f32 %v284, 0.6931472
          %v286 = vlog2.pop %v281
          %v287 = vmul.f32 %v286, 0.6931472
          %v288 = vlog2.pop %v282
          %v289 = vmul.f32 %v288, 0.6931472
          %v290 = vlog2.pop %v283
          %v291 = vmul.f32 %v290, 0.6931472
          %v292 = vmul.f32 %v276, %v285
          %v293 = vmul.f32 %v277, %v287
          %v294 = vmul.f32 %v278, %v289
          %v295 = vmul.f32 %v279, %v291
          %s296 = scalar_lea.vmem [#allocation2], 128
          %297 = vst [vmem:[%s296] sm:$0xff] %v292
          %298 = vst [vmem:[%s296 + $0x8] sm:$0xff] %v293
          %299 = vst [vmem:[%s296 + $0x10] sm:$0xff] %v294
          %300 = vst [vmem:[%s296 + $0x18] sm:$0xff] %v295
          %v301 = vmul.f32 %v177, %v177
          %v302 = vmul.f32 %v178, %v178
          %v303 = vmul.f32 %v179, %v179
          %v304 = vmul.f32 %v180, %v180
          %v305 = vadd.f32 %v301, %v210
          %v306 = vadd.f32 %v302, %v211
          %v307 = vadd.f32 %v303, %v212
          %v308 = vadd.f32 %v304, %v213
          %v309 = vadd.f32 %v305, 1.1754944e-38
          %v310 = vadd.f32 %v306, 1.1754944e-38
          %v311 = vadd.f32 %v307, 1.1754944e-38
          %v312 = vadd.f32 %v308, 1.1754944e-38
          %v313 = vlog2.pop %v309
          %v314 = vmul.f32 %v313, 0.6931472
          %v315 = vlog2.pop %v310
          %v316 = vmul.f32 %v315, 0.6931472
          %v317 = vlog2.pop %v311
          %v318 = vmul.f32 %v317, 0.6931472
          %v319 = vlog2.pop %v312
          %v320 = vmul.f32 %v319, 0.6931472
          %v321 = vmul.f32 %v305, %v314
          %v322 = vmul.f32 %v306, %v316
          %v323 = vmul.f32 %v307, %v318
          %v324 = vmul.f32 %v308, %v320
          %s325 = scalar_lea.vmem [#allocation2], 160
          %326 = vst [vmem:[%s325] sm:$0xff] %v321
          %327 = vst [vmem:[%s325 + $0x8] sm:$0xff] %v322
          %328 = vst [vmem:[%s325 + $0x10] sm:$0xff] %v323
          %329 = vst [vmem:[%s325 + $0x18] sm:$0xff] %v324
          %v330 = vadd.f32 %v301, %v239
          %v331 = vadd.f32 %v302, %v240
          %v332 = vadd.f32 %v303, %v241
          %v333 = vadd.f32 %v304, %v242
          %v334 = vadd.f32 %v330, 1.1754944e-38
          %v335 = vadd.f32 %v331, 1.1754944e-38
          %v336 = vadd.f32 %v332, 1.1754944e-38
          %v337 = vadd.f32 %v333, 1.1754944e-38
          %v338 = vlog2.pop %v334
          %v339 = vmul.f32 %v338, 0.6931472
          %v340 = vlog2.pop %v335
          %v341 = vmul.f32 %v340, 0.6931472
          %v342 = vlog2.pop %v336
          %v343 = vmul.f32 %v342, 0.6931472
          %v344 = vlog2.pop %v337
          %v345 = vmul.f32 %v344, 0.6931472
          %v346 = vmul.f32 %v330, %v339
          %v347 = vmul.f32 %v331, %v341
          %v348 = vmul.f32 %v332, %v343
          %v349 = vmul.f32 %v333, %v345
          %s350 = scalar_lea.vmem [#allocation2], 192
          %351 = vst [vmem:[%s350] sm:$0xff] %v346
          %352 = vst [vmem:[%s350 + $0x8] sm:$0xff] %v347
          %353 = vst [vmem:[%s350 + $0x10] sm:$0xff] %v348
          %354 = vst [vmem:[%s350 + $0x18] sm:$0xff] %v349
          %v355 = vadd.f32 %v301, %v272
          %v356 = vadd.f32 %v302, %v273
          %v357 = vadd.f32 %v303, %v274
          %v358 = vadd.f32 %v304, %v275
          %v359 = vadd.f32 %v355, 1.1754944e-38
          %v360 = vadd.f32 %v356, 1.1754944e-38
          %v361 = vadd.f32 %v357, 1.1754944e-38
          %v362 = vadd.f32 %v358, 1.1754944e-38
          %v363 = vlog2.pop %v359
          %v364 = vmul.f32 %v363, 0.6931472
          %v365 = vlog2.pop %v360
          %v366 = vmul.f32 %v365, 0.6931472
          %v367 = vlog2.pop %v361
          %v368 = vmul.f32 %v367, 0.6931472
          %v369 = vlog2.pop %v362
          %v370 = vmul.f32 %v369, 0.6931472
          %v371 = vmul.f32 %v355, %v364
          %v372 = vmul.f32 %v356, %v366
          %v373 = vmul.f32 %v357, %v368
          %v374 = vmul.f32 %v358, %v370
          %s375 = scalar_lea.vmem [#allocation2], 224
          %376 = vst [vmem:[%s375] sm:$0xff] %v371
          %377 = vst [vmem:[%s375 + $0x8] sm:$0xff] %v372
          %378 = vst [vmem:[%s375 + $0x10] sm:$0xff] %v373
          %379 = vst [vmem:[%s375 + $0x18] sm:$0xff] %v374
          %v380 = vsub.f32 %v177, 1.0
          %v381 = vsub.f32 %v178, 1.0
          %v382 = vsub.f32 %v179, 1.0
          %v383 = vsub.f32 %v180, 1.0
          %v384 = vmul.f32 %v380, %v380
          %v385 = vmul.f32 %v381, %v381
          %v386 = vmul.f32 %v382, %v382
          %v387 = vmul.f32 %v383, %v383
          %v388 = vadd.f32 %v384, %v210
          %v389 = vadd.f32 %v385, %v211
          %v390 = vadd.f32 %v386, %v212
          %v391 = vadd.f32 %v387, %v213
          %v392 = vadd.f32 %v388, 1.1754944e-38
          %v393 = vadd.f32 %v389, 1.1754944e-38
          %v394 = vadd.f32 %v390, 1.1754944e-38
          %v395 = vadd.f32 %v391, 1.1754944e-38
          %v396 = vlog2.pop %v392
          %v397 = vmul.f32 %v396, 0.6931472
          %v398 = vlog2.pop %v393
          %v399 = vmul.f32 %v398, 0.6931472
          %v400 = vlog2.pop %v394
          %v401 = vmul.f32 %v400, 0.6931472
          %v402 = vlog2.pop %v395
          %v403 = vmul.f32 %v402, 0.6931472
          %v404 = vmul.f32 %v388, %v397
          %v405 = vmul.f32 %v389, %v399
          %v406 = vmul.f32 %v390, %v401
          %v407 = vmul.f32 %v391, %v403
          %s408 = scalar_lea.vmem [#allocation2], 256
          %409 = vst [vmem:[%s408] sm:$0xff] %v404
          %410 = vst [vmem:[%s408 + $0x8] sm:$0xff] %v405
          %411 = vst [vmem:[%s408 + $0x10] sm:$0xff] %v406
          %412 = vst [vmem:[%s408 + $0x18] sm:$0xff] %v407
          %v413 = vadd.f32 %v384, %v239
          %v414 = vadd.f32 %v385, %v240
          %v415 = vadd.f32 %v386, %v241
          %v416 = vadd.f32 %v387, %v242
          %v417 = vadd.f32 %v413, 1.1754944e-38
          %v418 = vadd.f32 %v414, 1.1754944e-38
          %v419 = vadd.f32 %v415, 1.1754944e-38
          %v420 = vadd.f32 %v416, 1.1754944e-38
          %v421 = vlog2.pop %v417
          %v422 = vmul.f32 %v421, 0.6931472
          %v423 = vlog2.pop %v418
          %v424 = vmul.f32 %v423, 0.6931472
          %v425 = vlog2.pop %v419
          %v426 = vmul.f32 %v425, 0.6931472
          %v427 = vlog2.pop %v420
          %v428 = vmul.f32 %v427, 0.6931472
          %v429 = vmul.f32 %v413, %v422
          %v430 = vmul.f32 %v414, %v424
          %v431 = vmul.f32 %v415, %v426
          %v432 = vmul.f32 %v416, %v428
          %s433 = scalar_lea.vmem [#allocation2], 288
          %434 = vst [vmem:[%s433] sm:$0xff] %v429
          %435 = vst [vmem:[%s433 + $0x8] sm:$0xff] %v430
          %436 = vst [vmem:[%s433 + $0x10] sm:$0xff] %v431
          %437 = vst [vmem:[%s433 + $0x18] sm:$0xff] %v432
          %v438 = vadd.f32 %v384, %v272
          %v439 = vadd.f32 %v385, %v273
          %v440 = vadd.f32 %v386, %v274
          %v441 = vadd.f32 %v387, %v275
          %v442 = vadd.f32 %v438, 1.1754944e-38
          %v443 = vadd.f32 %v439, 1.1754944e-38
          %v444 = vadd.f32 %v440, 1.1754944e-38
          %v445 = vadd.f32 %v441, 1.1754944e-38
          %v446 = vlog2.pop %v442
          %v447 = vmul.f32 %v446, 0.6931472
          %v448 = vlog2.pop %v443
          %v449 = vmul.f32 %v448, 0.6931472
          %v450 = vlog2.pop %v444
          %v451 = vmul.f32 %v450, 0.6931472
          %v452 = vlog2.pop %v445
          %v453 = vmul.f32 %v452, 0.6931472
          %v454 = vmul.f32 %v438, %v447
          %v455 = vmul.f32 %v439, %v449
          %v456 = vmul.f32 %v440, %v451
          %v457 = vmul.f32 %v441, %v453
          %s458 = scalar_lea.vmem [#allocation2], 320
          %459 = vst [vmem:[%s458] sm:$0xff] %v454
          %460 = vst [vmem:[%s458 + $0x8] sm:$0xff] %v455
          %461 = vst [vmem:[%s458 + $0x10] sm:$0xff] %v456
          %462 = vst [vmem:[%s458 + $0x18] sm:$0xff] %v457
        $region28: #{tpu_custom_call.1} parent=23 // pred_fallthru
          _
        %v463 = vld [vmem:[%s128] sm:$0xff]
        %v464 = vld [vmem:[%s128 + $0x8] sm:$0xff]
        %v465 = vld [vmem:[%s128 + $0x10] sm:$0xff]
        %v466 = vld [vmem:[%s128 + $0x18] sm:$0xff]
        %v467 = vld [vmem:[%s128 + $0x20] sm:$0xf]
        %v468 = vld [vmem:[%s128 + $0x28] sm:$0xf]
        %v469 = vld [vmem:[%s128 + $0x30] sm:$0xf]
        %v470 = vld [vmem:[%s128 + $0x38] sm:$0xf]
        %v471 = vlaneseq
        %v472 = vshrl.u32 %v471, 7
        %v473 = vsub.s32 0, %v472
        %v474 = vrot.slane %v463, %v473
        %v475 = vlaneseq
        %v476 = vshrl.u32 %v475, 7
        %v477 = vsub.s32 0, %v476
        %v478 = vrot.slane %v464, %v477
        %v479 = vlaneseq
        %v480 = vshrl.u32 %v479, 7
        %v481 = vsub.s32 0, %v480
        %v482 = vrot.slane %v465, %v481
        %v483 = vlaneseq
        %v484 = vshrl.u32 %v483, 7
        %v485 = vsub.s32 0, %v484
        %v486 = vrot.slane %v466, %v485
        %v487 = vlaneseq
        %v488 = vshrl.u32 %v487, 7
        %v489 = vsub.s32 1, %v488
        %v490 = vrot.slane %v463, %v489
        %v491 = vlaneseq
        %v492 = vshrl.u32 %v491, 7
        %v493 = vsub.s32 1, %v492
        %v494 = vrot.slane %v464, %v493
        %v495 = vlaneseq
        %v496 = vshrl.u32 %v495, 7
        %v497 = vsub.s32 1, %v496
        %v498 = vrot.slane %v465, %v497
        %v499 = vlaneseq
        %v500 = vshrl.u32 %v499, 7
        %v501 = vsub.s32 1, %v500
        %v502 = vrot.slane %v466, %v501
        %v503 = vlaneseq
        %v504 = vshrl.u32 %v503, 7
        %v505 = vsub.s32 2, %v504
        %v506 = vrot.slane %v463, %v505
        %v507 = vlaneseq
        %v508 = vshrl.u32 %v507, 7
        %v509 = vsub.s32 2, %v508
        %v510 = vrot.slane %v464, %v509
        %v511 = vlaneseq
        %v512 = vshrl.u32 %v511, 7
        %v513 = vsub.s32 2, %v512
        %v514 = vrot.slane %v465, %v513
        %v515 = vlaneseq
        %v516 = vshrl.u32 %v515, 7
        %v517 = vsub.s32 2, %v516
        %v518 = vrot.slane %v466, %v517
        %v519 = vlaneseq
        %v520 = vshrl.u32 %v519, 7
        %v521 = vsub.s32 3, %v520
        %v522 = vrot.slane %v463, %v521
        %v523 = vlaneseq
        %v524 = vshrl.u32 %v523, 7
        %v525 = vsub.s32 3, %v524
        %v526 = vrot.slane %v464, %v525
        %v527 = vlaneseq
        %v528 = vshrl.u32 %v527, 7
        %v529 = vsub.s32 3, %v528
        %v530 = vrot.slane %v465, %v529
        %v531 = vlaneseq
        %v532 = vshrl.u32 %v531, 7
        %v533 = vsub.s32 3, %v532
        %v534 = vrot.slane %v466, %v533
        %v535 = vlaneseq
        %v536 = vshrl.u32 %v535, 7
        %v537 = vsub.s32 4, %v536
        %v538 = vrot.slane %v463, %v537
        %v539 = vlaneseq
        %v540 = vshrl.u32 %v539, 7
        %v541 = vsub.s32 4, %v540
        %v542 = vrot.slane %v464, %v541
        %v543 = vlaneseq
        %v544 = vshrl.u32 %v543, 7
        %v545 = vsub.s32 4, %v544
        %v546 = vrot.slane %v465, %v545
        %v547 = vlaneseq
        %v548 = vshrl.u32 %v547, 7
        %v549 = vsub.s32 4, %v548
        %v550 = vrot.slane %v466, %v549
        %v551 = vlaneseq
        %v552 = vshrl.u32 %v551, 7
        %v553 = vsub.s32 5, %v552
        %v554 = vrot.slane %v463, %v553
        %v555 = vlaneseq
        %v556 = vshrl.u32 %v555, 7
        %v557 = vsub.s32 5, %v556
        %v558 = vrot.slane %v464, %v557
        %v559 = vlaneseq
        %v560 = vshrl.u32 %v559, 7
        %v561 = vsub.s32 5, %v560
        %v562 = vrot.slane %v465, %v561
        %v563 = vlaneseq
        %v564 = vshrl.u32 %v563, 7
        %v565 = vsub.s32 5, %v564
        %v566 = vrot.slane %v466, %v565
        %v567 = vlaneseq
        %v568 = vshrl.u32 %v567, 7
        %v569 = vsub.s32 6, %v568
        %v570 = vrot.slane %v463, %v569
        %v571 = vlaneseq
        %v572 = vshrl.u32 %v571, 7
        %v573 = vsub.s32 6, %v572
        %v574 = vrot.slane %v464, %v573
        %v575 = vlaneseq
        %v576 = vshrl.u32 %v575, 7
        %v577 = vsub.s32 6, %v576
        %v578 = vrot.slane %v465, %v577
        %v579 = vlaneseq
        %v580 = vshrl.u32 %v579, 7
        %v581 = vsub.s32 6, %v580
        %v582 = vrot.slane %v466, %v581
        %v583 = vlaneseq
        %v584 = vshrl.u32 %v583, 7
        %v585 = vsub.s32 7, %v584
        %v586 = vrot.slane %v463, %v585
        %v587 = vlaneseq
        %v588 = vshrl.u32 %v587, 7
        %v589 = vsub.s32 7, %v588
        %v590 = vrot.slane %v464, %v589
        %v591 = vlaneseq
        %v592 = vshrl.u32 %v591, 7
        %v593 = vsub.s32 7, %v592
        %v594 = vrot.slane %v465, %v593
        %v595 = vlaneseq
        %v596 = vshrl.u32 %v595, 7
        %v597 = vsub.s32 7, %v596
        %v598 = vrot.slane %v466, %v597
        %v599 = vlaneseq
        %v600 = vshrl.u32 %v599, 7
        %v601 = vsub.s32 0, %v600
        %v602 = vrot.slane %v467, %v601
        %v603 = vlaneseq
        %v604 = vshrl.u32 %v603, 7
        %v605 = vsub.s32 0, %v604
        %v606 = vrot.slane %v468, %v605
        %v607 = vlaneseq
        %v608 = vshrl.u32 %v607, 7
        %v609 = vsub.s32 0, %v608
        %v610 = vrot.slane %v469, %v609
        %v611 = vlaneseq
        %v612 = vshrl.u32 %v611, 7
        %v613 = vsub.s32 0, %v612
        %v614 = vrot.slane %v470, %v613
        %v615 = vlaneseq
        %v616 = vshrl.u32 %v615, 7
        %v617 = vsub.s32 1, %v616
        %v618 = vrot.slane %v467, %v617
        %v619 = vlaneseq
        %v620 = vshrl.u32 %v619, 7
        %v621 = vsub.s32 1, %v620
        %v622 = vrot.slane %v468, %v621
        %v623 = vlaneseq
        %v624 = vshrl.u32 %v623, 7
        %v625 = vsub.s32 1, %v624
        %v626 = vrot.slane %v469, %v625
        %v627 = vlaneseq
        %v628 = vshrl.u32 %v627, 7
        %v629 = vsub.s32 1, %v628
        %v630 = vrot.slane %v470, %v629
        %v631 = vlaneseq
        %v632 = vshrl.u32 %v631, 7
        %v633 = vsub.s32 2, %v632
        %v634 = vrot.slane %v467, %v633
        %v635 = vlaneseq
        %v636 = vshrl.u32 %v635, 7
        %v637 = vsub.s32 2, %v636
        %v638 = vrot.slane %v468, %v637
        %v639 = vlaneseq
        %v640 = vshrl.u32 %v639, 7
        %v641 = vsub.s32 2, %v640
        %v642 = vrot.slane %v469, %v641
        %v643 = vlaneseq
        %v644 = vshrl.u32 %v643, 7
        %v645 = vsub.s32 2, %v644
        %v646 = vrot.slane %v470, %v645
        %v647 = vlaneseq
        %v648 = vshrl.u32 %v647, 7
        %v649 = vsub.s32 3, %v648
        %v650 = vrot.slane %v467, %v649
        %v651 = vlaneseq
        %v652 = vshrl.u32 %v651, 7
        %v653 = vsub.s32 3, %v652
        %v654 = vrot.slane %v468, %v653
        %v655 = vlaneseq
        %v656 = vshrl.u32 %v655, 7
        %v657 = vsub.s32 3, %v656
        %v658 = vrot.slane %v469, %v657
        %v659 = vlaneseq
        %v660 = vshrl.u32 %v659, 7
        %v661 = vsub.s32 3, %v660
        %v662 = vrot.slane %v470, %v661
        %s663 = smul.u32 0, 4
        %s664 = smul.addr %s663, 8
        %s665 = scalar_lea.vmem [#allocation2], %s664
        %v666 = vld [vmem:[%s665] sm:$0xff]
        %v667 = vld [vmem:[%s665 + $0x8] sm:$0xff]
        %v668 = vld [vmem:[%s665 + $0x10] sm:$0xff]
        %v669 = vld [vmem:[%s665 + $0x18] sm:$0xff]
        %v670 = vmul.f32 %v490, %v666
        %v671 = vmul.f32 %v494, %v667
        %v672 = vmul.f32 %v498, %v668
        %v673 = vmul.f32 %v502, %v669
        %v674 = vadd.f32 %v474, %v670
        %v675 = vadd.f32 %v478, %v671
        %v676 = vadd.f32 %v482, %v672
        %v677 = vadd.f32 %v486, %v673
        %s678 = sadd.s32 %s663, 4
        %s679 = smul.addr %s678, 8
        %s680 = scalar_lea.vmem [#allocation2], %s679
        %v681 = vld [vmem:[%s680] sm:$0xff]
        %v682 = vld [vmem:[%s680 + $0x8] sm:$0xff]
        %v683 = vld [vmem:[%s680 + $0x10] sm:$0xff]
        %v684 = vld [vmem:[%s680 + $0x18] sm:$0xff]
        %v685 = vmul.f32 %v506, %v681
        %v686 = vmul.f32 %v510, %v682
        %v687 = vmul.f32 %v514, %v683
        %v688 = vmul.f32 %v518, %v684
        %v689 = vadd.f32 %v674, %v685
        %v690 = vadd.f32 %v675, %v686
        %v691 = vadd.f32 %v676, %v687
        %v692 = vadd.f32 %v677, %v688
        %s693 = sadd.s32 %s663, 8
        %s694 = smul.addr %s693, 8
        %s695 = scalar_lea.vmem [#allocation2], %s694
        %v696 = vld [vmem:[%s695] sm:$0xff]
        %v697 = vld [vmem:[%s695 + $0x8] sm:$0xff]
        %v698 = vld [vmem:[%s695 + $0x10] sm:$0xff]
        %v699 = vld [vmem:[%s695 + $0x18] sm:$0xff]
        %v700 = vmul.f32 %v522, %v696
        %v701 = vmul.f32 %v526, %v697
        %v702 = vmul.f32 %v530, %v698
        %v703 = vmul.f32 %v534, %v699
        %v704 = vadd.f32 %v689, %v700
        %v705 = vadd.f32 %v690, %v701
        %v706 = vadd.f32 %v691, %v702
        %v707 = vadd.f32 %v692, %v703
        %s708 = sadd.s32 %s663, 12
        %s709 = smul.addr %s708, 8
        %s710 = scalar_lea.vmem [#allocation2], %s709
        %v711 = vld [vmem:[%s710] sm:$0xff]
        %v712 = vld [vmem:[%s710 + $0x8] sm:$0xff]
        %v713 = vld [vmem:[%s710 + $0x10] sm:$0xff]
        %v714 = vld [vmem:[%s710 + $0x18] sm:$0xff]
        %v715 = vmul.f32 %v538, %v711
        %v716 = vmul.f32 %v542, %v712
        %v717 = vmul.f32 %v546, %v713
        %v718 = vmul.f32 %v550, %v714
        %v719 = vadd.f32 %v704, %v715
        %v720 = vadd.f32 %v705, %v716
        %v721 = vadd.f32 %v706, %v717
        %v722 = vadd.f32 %v707, %v718
        %s723 = sadd.s32 %s663, 16
        %s724 = smul.addr %s723, 8
        %s725 = scalar_lea.vmem [#allocation2], %s724
        %v726 = vld [vmem:[%s725] sm:$0xff]
        %v727 = vld [vmem:[%s725 + $0x8] sm:$0xff]
        %v728 = vld [vmem:[%s725 + $0x10] sm:$0xff]
        %v729 = vld [vmem:[%s725 + $0x18] sm:$0xff]
        %v730 = vmul.f32 %v554, %v726
        %v731 = vmul.f32 %v558, %v727
        %v732 = vmul.f32 %v562, %v728
        %v733 = vmul.f32 %v566, %v729
        %v734 = vadd.f32 %v719, %v730
        %v735 = vadd.f32 %v720, %v731
        %v736 = vadd.f32 %v721, %v732
        %v737 = vadd.f32 %v722, %v733
        %s738 = sadd.s32 %s663, 20
        %s739 = smul.addr %s738, 8
        %s740 = scalar_lea.vmem [#allocation2], %s739
        %v741 = vld [vmem:[%s740] sm:$0xff]
        %v742 = vld [vmem:[%s740 + $0x8] sm:$0xff]
        %v743 = vld [vmem:[%s740 + $0x10] sm:$0xff]
        %v744 = vld [vmem:[%s740 + $0x18] sm:$0xff]
        %v745 = vmul.f32 %v570, %v741
        %v746 = vmul.f32 %v574, %v742
        %v747 = vmul.f32 %v578, %v743
        %v748 = vmul.f32 %v582, %v744
        %v749 = vadd.f32 %v734, %v745
        %v750 = vadd.f32 %v735, %v746
        %v751 = vadd.f32 %v736, %v747
        %v752 = vadd.f32 %v737, %v748
        %s753 = sadd.s32 %s663, 24
        %s754 = smul.addr %s753, 8
        %s755 = scalar_lea.vmem [#allocation2], %s754
        %v756 = vld [vmem:[%s755] sm:$0xff]
        %v757 = vld [vmem:[%s755 + $0x8] sm:$0xff]
        %v758 = vld [vmem:[%s755 + $0x10] sm:$0xff]
        %v759 = vld [vmem:[%s755 + $0x18] sm:$0xff]
        %v760 = vmul.f32 %v586, %v756
        %v761 = vmul.f32 %v590, %v757
        %v762 = vmul.f32 %v594, %v758
        %v763 = vmul.f32 %v598, %v759
        %v764 = vadd.f32 %v749, %v760
        %v765 = vadd.f32 %v750, %v761
        %v766 = vadd.f32 %v751, %v762
        %v767 = vadd.f32 %v752, %v763
        %s768 = sadd.s32 %s663, 28
        %s769 = smul.addr %s768, 8
        %s770 = scalar_lea.vmem [#allocation2], %s769
        %v771 = vld [vmem:[%s770] sm:$0xff]
        %v772 = vld [vmem:[%s770 + $0x8] sm:$0xff]
        %v773 = vld [vmem:[%s770 + $0x10] sm:$0xff]
        %v774 = vld [vmem:[%s770 + $0x18] sm:$0xff]
        %v775 = vmul.f32 %v602, %v771
        %v776 = vmul.f32 %v606, %v772
        %v777 = vmul.f32 %v610, %v773
        %v778 = vmul.f32 %v614, %v774
        %v779 = vadd.f32 %v764, %v775
        %v780 = vadd.f32 %v765, %v776
        %v781 = vadd.f32 %v766, %v777
        %v782 = vadd.f32 %v767, %v778
        %s783 = sadd.s32 %s663, 32
        %s784 = smul.addr %s783, 8
        %s785 = scalar_lea.vmem [#allocation2], %s784
        %v786 = vld [vmem:[%s785] sm:$0xff]
        %v787 = vld [vmem:[%s785 + $0x8] sm:$0xff]
        %v788 = vld [vmem:[%s785 + $0x10] sm:$0xff]
        %v789 = vld [vmem:[%s785 + $0x18] sm:$0xff]
        %v790 = vmul.f32 %v618, %v786
        %v791 = vmul.f32 %v622, %v787
        %v792 = vmul.f32 %v626, %v788
        %v793 = vmul.f32 %v630, %v789
        %v794 = vadd.f32 %v779, %v790
        %v795 = vadd.f32 %v780, %v791
        %v796 = vadd.f32 %v781, %v792
        %v797 = vadd.f32 %v782, %v793
        %s798 = sadd.s32 %s663, 36
        %s799 = smul.addr %s798, 8
        %s800 = scalar_lea.vmem [#allocation2], %s799
        %v801 = vld [vmem:[%s800] sm:$0xff]
        %v802 = vld [vmem:[%s800 + $0x8] sm:$0xff]
        %v803 = vld [vmem:[%s800 + $0x10] sm:$0xff]
        %v804 = vld [vmem:[%s800 + $0x18] sm:$0xff]
        %v805 = vmul.f32 %v634, %v801
        %v806 = vmul.f32 %v638, %v802
        %v807 = vmul.f32 %v642, %v803
        %v808 = vmul.f32 %v646, %v804
        %v809 = vadd.f32 %v794, %v805
        %v810 = vadd.f32 %v795, %v806
        %v811 = vadd.f32 %v796, %v807
        %v812 = vadd.f32 %v797, %v808
        %s813 = sadd.s32 %s663, 40
        %s814 = smul.addr %s813, 8
        %s815 = scalar_lea.vmem [#allocation2], %s814
        %v816 = vld [vmem:[%s815] sm:$0xff]
        %v817 = vld [vmem:[%s815 + $0x8] sm:$0xff]
        %v818 = vld [vmem:[%s815 + $0x10] sm:$0xff]
        %v819 = vld [vmem:[%s815 + $0x18] sm:$0xff]
        %v820 = vmul.f32 %v650, %v816
        %v821 = vmul.f32 %v654, %v817
        %v822 = vmul.f32 %v658, %v818
        %v823 = vmul.f32 %v662, %v819
        %v824 = vadd.f32 %v809, %v820
        %v825 = vadd.f32 %v810, %v821
        %v826 = vadd.f32 %v811, %v822
        %v827 = vadd.f32 %v812, %v823
        %s828 = smul.addr %s663, 8
        %s829 = scalar_lea.vmem %s123, %s828 [#allocation3]
        %830 = vst [vmem:[%s829] sm:$0xff] %v824
        %831 = vst [vmem:[%s829 + $0x8] sm:$0xff] %v825
        %832 = vst [vmem:[%s829 + $0x10] sm:$0xff] %v826
        %833 = vst [vmem:[%s829 + $0x18] sm:$0xff] %v827
        %s834 = sand.u32 %s63, 1
        %s835 = scalar_lea.sflag [#allocation4], %s834
        %s836 = sand.u32 %s63, 1
        %s837 = smul.addr %s836, 32
        %s838 = scalar_lea.vmem [#allocation3], %s837
        // Predicated region
        $region29: #{tpu_custom_call.1} parent=23 // pred_check
          %p839 = pneg %p73
        $region30: #{tpu_custom_call.1} parent=23 // pred_check_branch
          %841 = sbr.rel (%p839) target = $region32
        $region31: #{tpu_custom_call.1} parent=23 // pred_region
          %s843 = ssub.s32 512, 512
          %844 = vsyncadd %s835, %s843
          %s845 = smul.addr %s19, 4
          %s846 = smul.addr %s20, 4
          %s847 = sadd.s32 %s845, %s846
          %s848 = smul.addr %s847, 128
          %s849 = scalar_lea.hbm %s1, %s848
          %s851 = sshll.u32 %s838, 4
          %s852 = int_to_ptr.vmem [resolvable:$true] %s851
          %854 = dma.vmem_to_hbm [thread:$0]  %s852, 512, %s849, %s835
        $region32: #{tpu_custom_call.1} parent=23 // pred_fallthru
          _
      $region24: #{tpu_custom_call.1} parent=5 // pred_fallthru
        _
      %p855 = scmp.le.s32.totalorder 2, %s10
      // Predicated region
      $region33: #{tpu_custom_call.1} parent=5 // pred_check
        %p856 = pneg %p855
      $region34: #{tpu_custom_call.1} parent=5 // pred_check_branch
        %858 = sbr.rel (%p856) target = $region36
      $region35: #{tpu_custom_call.1} parent=5 // pred_region
        %s859 = ssub.s32 %s10, 2
        // Predicated region
        $region37: #{tpu_custom_call.1} parent=35 // pred_check
          %p860 = pneg %p79
        $region38: #{tpu_custom_call.1} parent=35 // pred_check_branch
          %862 = sbr.rel (%p860) target = $region40
        $region39: #{tpu_custom_call.1} parent=35 // pred_region
          %s863 = sand.u32 %s64, 1
          %s864 = scalar_lea.sflag [#allocation4], %s863
          %s865 = sand.u32 %s64, 1
          %s866 = smul.addr %s865, 32
          %s867 = scalar_lea.vmem [#allocation3], %s866
          %868 = dma.done %s864, 512
        $region40: #{tpu_custom_call.1} parent=35 // pred_fallthru
          _
      $region36: #{tpu_custom_call.1} parent=5 // pred_fallthru
        _
    $region6: #{tpu_custom_call.1} parent=1 // loop_footer
      %s14 = sadd.s32 1, %s10
    $region7: #{tpu_custom_call.1} parent=1 // loop_footer_branch
      %9 = sbr.rel target = $region3
    $region8: #{tpu_custom_call.1} parent=1 // loop_exit
      _
    %869 = vsyncpa [#allocation4], 1
    %s870 = scalar_lea.sflag [#allocation4], 1
    %871 = vsyncpa %s870, 1

</llo_original>
